<compile_context>
chip_gen: v5e
topology: v5e:2x2
jax: 0.10.0
libtpu: 0.0.40
codegen_flags: <defaults>
</compile_context>

<pallas_src>
import math

import jax
import jax.numpy as jnp
import numpy as np
from jax.experimental import pallas as pl
from jax.experimental.pallas import tpu as pltpu

INPUT_DIM = 64
HIDDEN = 128
OUTPUT_DIM = 16

DIM = 128           # padded, lane-dense width used for every matmul dimension
N_LAYERS = 3
BIAS_ROWS = 8       # bias stack padded to 8 sublanes for (8,128) alignment
TILE_B = 512        # batch tile: >=256 fills the 256-wide v6e/v7x MXU


def _round_up(n, m):
    return ((n + m - 1) // m) * m


# ----------------------------------------------------------------------------
# Fused MLP kernel (one batch tile per grid step)
# ----------------------------------------------------------------------------
def _column_kernel(x_ref, w_ref, b_ref, out_ref):
    # x_ref  : [TILE_B, 128] bf16  (features padded 64->128 with zeros)
    # w_ref  : [3, 128, 128] bf16  pre-transposed [in, out] per layer;
    #          layer-1 rows 64..127 and layer-3 cols 16..127 are zero
    # b_ref  : [8, 128]      f32   rows 0..2 = b1/b2/b3 (b3 cols 16..127 = 0)
    # out_ref: [TILE_B, 128] f32   cols 16..127 come out as zeros
    x = x_ref[...]
    h = jnp.dot(x, w_ref[0], preferred_element_type=jnp.float32) + b_ref[0:1, :]
    h = jnp.maximum(h, 0.0)
    h = jnp.dot(h.astype(jnp.bfloat16), w_ref[1],
                preferred_element_type=jnp.float32) + b_ref[1:2, :]
    h = jnp.maximum(h, 0.0)
    out = jnp.dot(h.astype(jnp.bfloat16), w_ref[2],
                  preferred_element_type=jnp.float32) + b_ref[2:3, :]
    out_ref[...] = out.astype(out_ref.dtype)


def column_forward(x, params, tile_b=TILE_B):
    B = x.shape[0]
    tile = min(tile_b, _round_up(B, 8))     # shrink tile for tiny batches
    b_pad = _round_up(B, tile)
    n_tiles = b_pad // tile

    # pad batch to a tile multiple and features to the lane-dense width
    x_p = jnp.zeros((b_pad, DIM), jnp.bfloat16)
    x_p = x_p.at[:B, :INPUT_DIM].set(x.astype(jnp.bfloat16))

    out = pl.pallas_call(
        _column_kernel,
        out_shape=jax.ShapeDtypeStruct((b_pad, DIM), jnp.float32),
        grid=(n_tiles,),
        in_specs=[
            # activations: tiled over the batch grid axis
            pl.BlockSpec((tile, DIM), lambda i: (i, 0)),
            # weights / biases: constant index_map -> fetched once, VMEM-resident
            pl.BlockSpec((N_LAYERS, DIM, DIM), lambda i: (0, 0, 0)),
            pl.BlockSpec((BIAS_ROWS, DIM), lambda i: (0, 0)),
        ],
        out_specs=pl.BlockSpec((tile, DIM), lambda i: (i, 0)),
        compiler_params=pltpu.CompilerParams(
            dimension_semantics=("parallel",)),
    )(x_p, params['w'], params['b'])

    return out[:B, :OUTPUT_DIM]


# ----------------------------------------------------------------------------
# Parameter setup (deterministic) + pruning emulation + packing
# ----------------------------------------------------------------------------
def l1_unstructured_prune(w, amount=0.4):
    """Emulate prune.l1_unstructured + prune.remove: zero smallest-|w| entries."""
    w_np = np.asarray(w, np.float32)
    flat = w_np.reshape(-1).copy()
    n_prune = int(round(amount * flat.size))
    if n_prune:
        idx = np.argsort(np.abs(flat), kind='stable')[:n_prune]
        flat[idx] = 0.0
    return flat.reshape(w_np.shape)


def _linear_init(key, in_features, out_features):
    kw, kb = jax.random.split(key)
    bound = 1.0 / math.sqrt(in_features)
    w = jax.random.uniform(kw, (out_features, in_features), jnp.float32,
                           -bound, bound)
    b = jax.random.uniform(kb, (out_features,), jnp.float32, -bound, bound)
    return np.asarray(w), np.asarray(b)


def init_params(key):
    k1, k2, k3 = jax.random.split(key, 3)
    w1, b1 = _linear_init(k1, INPUT_DIM, HIDDEN)
    w2, b2 = _linear_init(k2, HIDDEN, HIDDEN)
    w3, b3 = _linear_init(k3, HIDDEN, OUTPUT_DIM)
    # apply_pruning(): every nn.Linear weight gets 40% L1-unstructured pruning
    w1 = l1_unstructured_prune(w1, 0.4)
    w2 = l1_unstructured_prune(w2, 0.4)
    w3 = l1_unstructured_prune(w3, 0.4)

    # pack pre-transposed, zero-padded [128,128] weights into one bf16 stack
    w_stack = np.zeros((N_LAYERS, DIM, DIM), np.float32)
    w_stack[0, :INPUT_DIM, :HIDDEN] = w1.T
    w_stack[1, :HIDDEN, :HIDDEN] = w2.T
    w_stack[2, :HIDDEN, :OUTPUT_DIM] = w3.T

    b_stack = np.zeros((BIAS_ROWS, DIM), np.float32)
    b_stack[0, :HIDDEN] = b1
    b_stack[1, :HIDDEN] = b2
    b_stack[2, :OUTPUT_DIM] = b3

    return {'w': jnp.asarray(w_stack, jnp.bfloat16),
            'b': jnp.asarray(b_stack, jnp.float32)}


# ----------------------------------------------------------------------------
# Pure numpy reference (uses the same bf16-rounded parameters as the kernel)
# ----------------------------------------------------------------------------
def _bf16_round(a):
    return np.asarray(jnp.asarray(a, jnp.float32).astype(jnp.bfloat16),
                      np.float32)


def reference_forward(x, params):
    w = np.asarray(params['w'], np.float32)   # bf16-rounded values
    b = np.asarray(params['b'], np.float32)
    B = x.shape[0]
    xp = np.zeros((B, DIM), np.float32)
    xp[:, :INPUT_DIM] = _bf16_round(np.asarray(x, np.float32))
    h = np.maximum(xp @ w[0] + b[0], 0.0)
    h = np.maximum(_bf16_round(h) @ w[1] + b[1], 0.0)
    out = _bf16_round(h) @ w[2] + b[2]
    return out[:, :OUTPUT_DIM]


if __name__ == "__main__":
    key = jax.random.PRNGKey(0)
    k_x, k_p = jax.random.split(key)

    BATCH = 8
    x = jax.random.normal(k_x, (BATCH, INPUT_DIM), jnp.float32)
    params = init_params(k_p)

    out = column_forward(x, params)
    jax.block_until_ready(out)

    ref = reference_forward(np.asarray(x), params)
    np.testing.assert_allclose(np.asarray(out), ref, rtol=5e-3, atol=5e-3)

    print("KERNEL_OK")
</pallas_src>

<mosaic_0001>
module attributes {stable_mosaic.version = 11 : i64} {
  func.func @_column_kernel(%arg0: i32, %arg1: memref<8x128xbf16, #tpu.memory_space<vmem>>, %arg2: memref<3x128x128xbf16, #tpu.memory_space<vmem>>, %arg3: memref<8x128xf32, #tpu.memory_space<vmem>>, %arg4: memref<8x128xf32, #tpu.memory_space<vmem>>) attributes {dimension_semantics = [#tpu.dimension_semantics<parallel>], iteration_bounds = array<i64: 1>, scalar_prefetch = 0 : i64, scratch_operands = 0 : i64, tpu.core_type = #tpu.core_type<tc>, window_params = [{transform_indices = @transform_0, window_bounds = array<i64: 8, 128>}, {pipeline_mode = #tpu.pipeline_mode<synchronous>, transform_indices = @transform_1, window_bounds = array<i64: 3, 128, 128>}, {pipeline_mode = #tpu.pipeline_mode<synchronous>, transform_indices = @transform_2, window_bounds = array<i64: 8, 128>}, {transform_indices = @transform_3, window_bounds = array<i64: 8, 128>}]} {
    %c0 = arith.constant 0 : index
    %c0_0 = arith.constant 0 : index
    %0 = vector.load %arg1[%c0, %c0_0] : memref<8x128xbf16, #tpu.memory_space<vmem>>, vector<8x128xbf16>
    %c0_1 = arith.constant 0 : index
    %c0_2 = arith.constant 0 : index
    %c0_3 = arith.constant 0 : index
    %1 = vector.load %arg2[%c0_1, %c0_2, %c0_3] : memref<3x128x128xbf16, #tpu.memory_space<vmem>>, vector<1x128x128xbf16>
    %2 = vector.shape_cast %1 : vector<1x128x128xbf16> to vector<128x128xbf16>
    %cst = arith.constant dense<0.000000e+00> : vector<8x128xf32>
    %3 = tpu.matmul %0, %2, %cst {dimension_numbers = #tpu.dot_dimension_numbers<[1], [0], [0], [1], [0, 0, 1, 1], [], []>} : vector<8x128xbf16>, vector<128x128xbf16>, vector<8x128xf32> -> vector<8x128xf32>
    %c0_4 = arith.constant 0 : index
    %c0_5 = arith.constant 0 : index
    %4 = vector.load %arg3[%c0_4, %c0_5] : memref<8x128xf32, #tpu.memory_space<vmem>>, vector<1x128xf32>
    %5 = vector.broadcast %4 : vector<1x128xf32> to vector<8x128xf32>
    %6 = arith.addf %3, %5 : vector<8x128xf32>
    %cst_6 = arith.constant 0.000000e+00 : f32
    %7 = vector.broadcast %cst_6 : f32 to vector<8x128xf32>
    %8 = arith.maximumf %6, %7 : vector<8x128xf32>
    %9 = arith.truncf %8 : vector<8x128xf32> to vector<8x128xbf16>
    %c1 = arith.constant 1 : index
    %c0_7 = arith.constant 0 : index
    %c0_8 = arith.constant 0 : index
    %10 = vector.load %arg2[%c1, %c0_7, %c0_8] : memref<3x128x128xbf16, #tpu.memory_space<vmem>>, vector<1x128x128xbf16>
    %11 = vector.shape_cast %10 : vector<1x128x128xbf16> to vector<128x128xbf16>
    %cst_9 = arith.constant dense<0.000000e+00> : vector<8x128xf32>
    %12 = tpu.matmul %9, %11, %cst_9 {dimension_numbers = #tpu.dot_dimension_numbers<[1], [0], [0], [1], [0, 0, 1, 1], [], []>} : vector<8x128xbf16>, vector<128x128xbf16>, vector<8x128xf32> -> vector<8x128xf32>
    %c1_10 = arith.constant 1 : index
    %c0_11 = arith.constant 0 : index
    %13 = vector.load %arg3[%c1_10, %c0_11] : memref<8x128xf32, #tpu.memory_space<vmem>>, vector<1x128xf32>
    %14 = vector.broadcast %13 : vector<1x128xf32> to vector<8x128xf32>
    %15 = arith.addf %12, %14 : vector<8x128xf32>
    %cst_12 = arith.constant 0.000000e+00 : f32
    %16 = vector.broadcast %cst_12 : f32 to vector<8x128xf32>
    %17 = arith.maximumf %15, %16 : vector<8x128xf32>
    %18 = arith.truncf %17 : vector<8x128xf32> to vector<8x128xbf16>
    %c2 = arith.constant 2 : index
    %c0_13 = arith.constant 0 : index
    %c0_14 = arith.constant 0 : index
    %19 = vector.load %arg2[%c2, %c0_13, %c0_14] : memref<3x128x128xbf16, #tpu.memory_space<vmem>>, vector<1x128x128xbf16>
    %20 = vector.shape_cast %19 : vector<1x128x128xbf16> to vector<128x128xbf16>
    %cst_15 = arith.constant dense<0.000000e+00> : vector<8x128xf32>
    %21 = tpu.matmul %18, %20, %cst_15 {dimension_numbers = #tpu.dot_dimension_numbers<[1], [0], [0], [1], [0, 0, 1, 1], [], []>} : vector<8x128xbf16>, vector<128x128xbf16>, vector<8x128xf32> -> vector<8x128xf32>
    %c2_16 = arith.constant 2 : index
    %c0_17 = arith.constant 0 : index
    %22 = vector.load %arg3[%c2_16, %c0_17] : memref<8x128xf32, #tpu.memory_space<vmem>>, vector<1x128xf32>
    %23 = vector.broadcast %22 : vector<1x128xf32> to vector<8x128xf32>
    %24 = arith.addf %21, %23 : vector<8x128xf32>
    %c0_18 = arith.constant 0 : index
    %c0_19 = arith.constant 0 : index
    %25 = vector.load %arg4[%c0_18, %c0_19] : memref<8x128xf32, #tpu.memory_space<vmem>>, vector<8x128xf32>
    tpu.vector_store %arg4[%c0_18, %c0_19], %24 {strides = array<i32>} : memref<8x128xf32, #tpu.memory_space<vmem>>, vector<8x128xf32>,
    return
  }
  func.func @transform_0(%arg0: i32) -> (i32, i32) {
    %c0_i32 = arith.constant 0 : i32
    %c0_i32_0 = arith.constant 0 : i32
    return %arg0, %c0_i32 : i32, i32
  }
  func.func @transform_1(%arg0: i32) -> (i32, i32, i32) {
    %c0_i32 = arith.constant 0 : i32
    %c0_i32_0 = arith.constant 0 : i32
    %c0_i32_1 = arith.constant 0 : i32
    %c0_i32_2 = arith.constant 0 : i32
    return %c0_i32, %c0_i32_0, %c0_i32_1 : i32, i32, i32
  }
  func.func @transform_2(%arg0: i32) -> (i32, i32) {
    %c0_i32 = arith.constant 0 : i32
    %c0_i32_0 = arith.constant 0 : i32
    %c0_i32_1 = arith.constant 0 : i32
    return %c0_i32, %c0_i32_0 : i32, i32
  }
  func.func @transform_3(%arg0: i32) -> (i32, i32) {
    %c0_i32 = arith.constant 0 : i32
    %c0_i32_0 = arith.constant 0 : i32
    return %arg0, %c0_i32 : i32, i32
  }
}

</mosaic_0001>

<llo_original>
// kernel: tpu_custom_call.1
$region0: #{tpu_custom_call.1}
  #allocation0 [shape = 'u32[]', space=smem, size = 0x4, offset = 0x4, fixed_abs, tag = 'smem constant byte address 0x4 - core index']
  #allocation1 [shape = 'u32[72,128]{1,0:T(1,128)}', space=vmem, size = 0x9000, scoped, tag = 'internal scratch']
  %s0 = inlined_call_operand.hbm [shape: bf16[8,128], index: 0, kind: input, shape index: {}]
  %s1 = inlined_call_operand.hbm [shape: bf16[3,128,128], index: 1, kind: input, shape index: {}]
  %s2 = inlined_call_operand.hbm [shape: f32[8,128], index: 2, kind: input, shape index: {}]
  %s3 = inlined_call_operand.hbm [shape: f32[8,128], index: 3, kind: output, shape index: {}]
  %s4 = sld [smem:[#allocation0]]
  $region34: #{tpu_custom_call.1} parent=0
    _
  %s6 = ssub.s32 1, %s4
  %s7 = scalar_select 0, %s6, %s4
  $region1: #{tpu_custom_call.1} parent=0
    #allocation2 [shape = 'u8[2048]{0}', space=vmem, size = 0x800, scoped, tag = 'input window, operand 0, single buffered']
    #allocation3 [shape = 's32[1]{0}', space=sflag, size = 0x4, scoped, tag = 'scoped memory for tpu_custom_call.1']
    #allocation4 [shape = 's32[1]{0}', space=sflag, size = 0x4, scoped, tag = 'scoped memory for tpu_custom_call.1']
    #allocation5 [shape = 'u8[98304]{0}', space=vmem, size = 0x18000, scoped, tag = 'input window, operand 1, single buffered']
    #allocation6 [shape = 's32[1]{0}', space=sflag, size = 0x4, scoped, tag = 'scoped memory for tpu_custom_call.1']
    #allocation7 [shape = 'u8[4096]{0}', space=vmem, size = 0x1000, scoped, tag = 'input window, operand 2, single buffered']
    #allocation8 [shape = 'u8[4096]{0}', space=vmem, size = 0x1000, scoped, tag = 'output window, operand 0, single buffered']
    %8 = vsyncpa [#allocation3], 0
    %9 = vsyncpa [#allocation6], 0
    %10 = vsyncpa [#allocation4], 0
    // Predicated region
    $region2: #{tpu_custom_call.1} parent=1 // pred_check
      _
    $region3: #{tpu_custom_call.1} parent=1 // pred_check_branch
      %12 = sbr.rel (0) target = $region5
    $region4: #{tpu_custom_call.1} parent=1 // pred_region
      %14 = vsyncadd [#allocation3], 0
      %s16 = sshll.u32 %s0, 4
      %s17 = int_to_ptr.hbm [resolvable:$true] %s16
      %s18 = sshll.u32 [#allocation2], 4
      %s19 = int_to_ptr.vmem [resolvable:$true] %s18
      %21 = dma.hbm_to_vmem [thread:$0]  %s17, 64, %s19, [#allocation3]
    $region5: #{tpu_custom_call.1} parent=1 // pred_fallthru
      _
    // Predicated region
    $region6: #{tpu_custom_call.1} parent=1 // pred_check
      _
    $region7: #{tpu_custom_call.1} parent=1 // pred_check_branch
      %23 = sbr.rel (0) target = $region9
    $region8: #{tpu_custom_call.1} parent=1 // pred_region
      %25 = vsyncadd [#allocation6], 0
      %s26 = sshll.u32 %s1, 4
      %s27 = int_to_ptr.hbm [resolvable:$true] %s26
      %s28 = sshll.u32 [#allocation5], 4
      %s29 = int_to_ptr.vmem [resolvable:$true] %s28
      %34 = dma.hbm_to_vmem [thread:$0]  %s27, 3072, %s29, [#allocation6], 64, 64, 4
    $region9: #{tpu_custom_call.1} parent=1 // pred_fallthru
      _
    // Predicated region
    $region10: #{tpu_custom_call.1} parent=1 // pred_check
      _
    $region11: #{tpu_custom_call.1} parent=1 // pred_check_branch
      %36 = sbr.rel (0) target = $region13
    $region12: #{tpu_custom_call.1} parent=1 // pred_region
      %38 = vsyncadd [#allocation6], 0
      %s40 = sshll.u32 %s2, 4
      %s41 = int_to_ptr.hbm [resolvable:$true] %s40
      %s42 = sshll.u32 [#allocation7], 4
      %s43 = int_to_ptr.vmem [resolvable:$true] %s42
      %45 = dma.hbm_to_vmem [thread:$0]  %s41, 128, %s43, [#allocation6]
    $region13: #{tpu_custom_call.1} parent=1 // pred_fallthru
      _
    // Predicated region
    $region14: #{tpu_custom_call.1} parent=1 // pred_check
      _
    $region15: #{tpu_custom_call.1} parent=1 // pred_check_branch
      %47 = sbr.rel (0) target = $region17
    $region16: #{tpu_custom_call.1} parent=1 // pred_region
      %49 = dma.done [#allocation3], 64
    $region17: #{tpu_custom_call.1} parent=1 // pred_fallthru
      _
    // Predicated region
    $region18: #{tpu_custom_call.1} parent=1 // pred_check
      _
    $region19: #{tpu_custom_call.1} parent=1 // pred_check_branch
      %51 = sbr.rel (0) target = $region21
    $region20: #{tpu_custom_call.1} parent=1 // pred_region
      %53 = dma.done [#allocation6], 3072
    $region21: #{tpu_custom_call.1} parent=1 // pred_fallthru
      _
    // Predicated region
    $region22: #{tpu_custom_call.1} parent=1 // pred_check
      _
    $region23: #{tpu_custom_call.1} parent=1 // pred_check_branch
      %55 = sbr.rel (0) target = $region25
    $region24: #{tpu_custom_call.1} parent=1 // pred_region
      %57 = dma.done [#allocation6], 128
    $region25: #{tpu_custom_call.1} parent=1 // pred_fallthru
      _
    %v58 = vld [vmem:[#allocation2] sm:$0xf]
    %v59 = vld [vmem:[#allocation5] sm:$0xf]
    %v60 = vld [vmem:[#allocation5 + $0x4] sm:$0xf]
    %v61 = vld [vmem:[#allocation5 + $0x8] sm:$0xf]
    %v62 = vld [vmem:[#allocation5 + $0xc] sm:$0xf]
    %v63 = vld [vmem:[#allocation5 + $0x10] sm:$0xf]
    %v64 = vld [vmem:[#allocation5 + $0x14] sm:$0xf]
    %v65 = vld [vmem:[#allocation5 + $0x18] sm:$0xf]
    %v66 = vld [vmem:[#allocation5 + $0x1c] sm:$0xf]
    %v67 = vld [vmem:[#allocation5 + $0x20] sm:$0xf]
    %v68 = vld [vmem:[#allocation5 + $0x24] sm:$0xf]
    %v69 = vld [vmem:[#allocation5 + $0x28] sm:$0xf]
    %v70 = vld [vmem:[#allocation5 + $0x2c] sm:$0xf]
    %v71 = vld [vmem:[#allocation5 + $0x30] sm:$0xf]
    %v72 = vld [vmem:[#allocation5 + $0x34] sm:$0xf]
    %v73 = vld [vmem:[#allocation5 + $0x38] sm:$0xf]
    %v74 = vld [vmem:[#allocation5 + $0x3c] sm:$0xf]
    %v75 = vld [vmem:[#allocation7] sm:$0x1]
    %v76 = vperm.slane %v75, 0
    %v93 = vunpack.c.l.b16 %v59
    %v94 = vunpack.c.l.b16 %v60
    %v95 = vunpack.c.l.b16 %v61
    %v96 = vunpack.c.l.b16 %v62
    %v97 = vunpack.c.l.b16 %v63
    %v98 = vunpack.c.l.b16 %v64
    %v99 = vunpack.c.l.b16 %v65
    %v100 = vunpack.c.l.b16 %v66
    %v101 = vunpack.c.l.b16 %v67
    %v102 = vunpack.c.l.b16 %v68
    %v103 = vunpack.c.l.b16 %v69
    %v104 = vunpack.c.l.b16 %v70
    %v105 = vunpack.c.l.b16 %v71
    %v106 = vunpack.c.l.b16 %v72
    %v107 = vunpack.c.l.b16 %v73
    %v108 = vunpack.c.l.b16 %v74
    %v109 = vpack.c.b16 %v94, %v93
    %v110 = vpack.c.b16 %v96, %v95
    %v111 = vpack.c.b16 %v98, %v97
    %v112 = vpack.c.b16 %v100, %v99
    %v113 = vpack.c.b16 %v102, %v101
    %v114 = vpack.c.b16 %v104, %v103
    %v115 = vpack.c.b16 %v106, %v105
    %v116 = vpack.c.b16 %v108, %v107
    %125 = vmatpush.bf16.msra.mxu0 %v116
    %126 = vmatpush.bf16.msra.mxu0 %v115
    %127 = vmatpush.bf16.msra.mxu0 %v114
    %128 = vmatpush.bf16.msra.mxu0 %v113
    %129 = vmatpush.bf16.msra.mxu0 %v112
    %130 = vmatpush.bf16.msra.mxu0 %v111
    %131 = vmatpush.bf16.msra.mxu0 %v110
    %132 = vmatpush.bf16.msra.mxu0 %v109
    %133 = vmatmul.bf16.gmra.mxu0 %v58
    %v134 = vpop.f32.mrf.mxu0
    %v135 = vadd.f32 %v76, %v134
    %v136 = vpop.f32.mrf.mxu0
    %137 = vdwg.mxu0
    %v138 = vmax.f32 %v135, 0.0
    %v139 = vpack.c.bf16 %v138, %v138
    %s140 = scalar_lea.vmem [#allocation5], 64
    %v141 = vld [vmem:[%s140] sm:$0xf]
    %v142 = vld [vmem:[%s140 + $0x4] sm:$0xf]
    %v143 = vld [vmem:[%s140 + $0x8] sm:$0xf]
    %v144 = vld [vmem:[%s140 + $0xc] sm:$0xf]
    %v145 = vld [vmem:[%s140 + $0x10] sm:$0xf]
    %v146 = vld [vmem:[%s140 + $0x14] sm:$0xf]
    %v147 = vld [vmem:[%s140 + $0x18] sm:$0xf]
    %v148 = vld [vmem:[%s140 + $0x1c] sm:$0xf]
    %v149 = vld [vmem:[%s140 + $0x20] sm:$0xf]
    %v150 = vld [vmem:[%s140 + $0x24] sm:$0xf]
    %v151 = vld [vmem:[%s140 + $0x28] sm:$0xf]
    %v152 = vld [vmem:[%s140 + $0x2c] sm:$0xf]
    %v153 = vld [vmem:[%s140 + $0x30] sm:$0xf]
    %v154 = vld [vmem:[%s140 + $0x34] sm:$0xf]
    %v155 = vld [vmem:[%s140 + $0x38] sm:$0xf]
    %v156 = vld [vmem:[%s140 + $0x3c] sm:$0xf]
    %v157 = vld [vmem:[#allocation7 + $0x1] sm:$0x1]
    %v158 = vperm.slane %v157, 0
    %v175 = vunpack.c.l.b16 %v141
    %v176 = vunpack.c.l.b16 %v142
    %v177 = vunpack.c.l.b16 %v143
    %v178 = vunpack.c.l.b16 %v144
    %v179 = vunpack.c.l.b16 %v145
    %v180 = vunpack.c.l.b16 %v146
    %v181 = vunpack.c.l.b16 %v147
    %v182 = vunpack.c.l.b16 %v148
    %v183 = vunpack.c.l.b16 %v149
    %v184 = vunpack.c.l.b16 %v150
    %v185 = vunpack.c.l.b16 %v151
    %v186 = vunpack.c.l.b16 %v152
    %v187 = vunpack.c.l.b16 %v153
    %v188 = vunpack.c.l.b16 %v154
    %v189 = vunpack.c.l.b16 %v155
    %v190 = vunpack.c.l.b16 %v156
    %v191 = vpack.c.b16 %v176, %v175
    %v192 = vpack.c.b16 %v178, %v177
    %v193 = vpack.c.b16 %v180, %v179
    %v194 = vpack.c.b16 %v182, %v181
    %v195 = vpack.c.b16 %v184, %v183
    %v196 = vpack.c.b16 %v186, %v185
    %v197 = vpack.c.b16 %v188, %v187
    %v198 = vpack.c.b16 %v190, %v189
    %207 = vmatpush.bf16.msra.mxu0 %v198
    %208 = vmatpush.bf16.msra.mxu0 %v197
    %209 = vmatpush.bf16.msra.mxu0 %v196
    %210 = vmatpush.bf16.msra.mxu0 %v195
    %211 = vmatpush.bf16.msra.mxu0 %v194
    %212 = vmatpush.bf16.msra.mxu0 %v193
    %213 = vmatpush.bf16.msra.mxu0 %v192
    %214 = vmatpush.bf16.msra.mxu0 %v191
    %215 = vmatmul.bf16.gmra.mxu0 %v139
    %v216 = vpop.f32.mrf.mxu0
    %v217 = vadd.f32 %v158, %v216
    %v218 = vpop.f32.mrf.mxu0
    %219 = vdwg.mxu0
    %v220 = vmax.f32 %v217, 0.0
    %v221 = vpack.c.bf16 %v220, %v220
    %s222 = scalar_lea.vmem [#allocation5], 128
    %v223 = vld [vmem:[%s222] sm:$0xf]
    %v224 = vld [vmem:[%s222 + $0x4] sm:$0xf]
    %v225 = vld [vmem:[%s222 + $0x8] sm:$0xf]
    %v226 = vld [vmem:[%s222 + $0xc] sm:$0xf]
    %v227 = vld [vmem:[%s222 + $0x10] sm:$0xf]
    %v228 = vld [vmem:[%s222 + $0x14] sm:$0xf]
    %v229 = vld [vmem:[%s222 + $0x18] sm:$0xf]
    %v230 = vld [vmem:[%s222 + $0x1c] sm:$0xf]
    %v231 = vld [vmem:[%s222 + $0x20] sm:$0xf]
    %v232 = vld [vmem:[%s222 + $0x24] sm:$0xf]
    %v233 = vld [vmem:[%s222 + $0x28] sm:$0xf]
    %v234 = vld [vmem:[%s222 + $0x2c] sm:$0xf]
    %v235 = vld [vmem:[%s222 + $0x30] sm:$0xf]
    %v236 = vld [vmem:[%s222 + $0x34] sm:$0xf]
    %v237 = vld [vmem:[%s222 + $0x38] sm:$0xf]
    %v238 = vld [vmem:[%s222 + $0x3c] sm:$0xf]
    %v239 = vld [vmem:[#allocation7 + $0x2] sm:$0x1]
    %v240 = vperm.slane %v239, 0
    %v257 = vunpack.c.l.b16 %v223
    %v258 = vunpack.c.l.b16 %v224
    %v259 = vunpack.c.l.b16 %v225
    %v260 = vunpack.c.l.b16 %v226
    %v261 = vunpack.c.l.b16 %v227
    %v262 = vunpack.c.l.b16 %v228
    %v263 = vunpack.c.l.b16 %v229
    %v264 = vunpack.c.l.b16 %v230
    %v265 = vunpack.c.l.b16 %v231
    %v266 = vunpack.c.l.b16 %v232
    %v267 = vunpack.c.l.b16 %v233
    %v268 = vunpack.c.l.b16 %v234
    %v269 = vunpack.c.l.b16 %v235
    %v270 = vunpack.c.l.b16 %v236
    %v271 = vunpack.c.l.b16 %v237
    %v272 = vunpack.c.l.b16 %v238
    %v273 = vpack.c.b16 %v258, %v257
    %v274 = vpack.c.b16 %v260, %v259
    %v275 = vpack.c.b16 %v262, %v261
    %v276 = vpack.c.b16 %v264, %v263
    %v277 = vpack.c.b16 %v266, %v265
    %v278 = vpack.c.b16 %v268, %v267
    %v279 = vpack.c.b16 %v270, %v269
    %v280 = vpack.c.b16 %v272, %v271
    %289 = vmatpush.bf16.msra.mxu0 %v280
    %290 = vmatpush.bf16.msra.mxu0 %v279
    %291 = vmatpush.bf16.msra.mxu0 %v278
    %292 = vmatpush.bf16.msra.mxu0 %v277
    %293 = vmatpush.bf16.msra.mxu0 %v276
    %294 = vmatpush.bf16.msra.mxu0 %v275
    %295 = vmatpush.bf16.msra.mxu0 %v274
    %296 = vmatpush.bf16.msra.mxu0 %v273
    %297 = vmatmul.bf16.gmra.mxu0 %v221
    %v298 = vpop.f32.mrf.mxu0
    %v299 = vadd.f32 %v240, %v298
    %v300 = vpop.f32.mrf.mxu0
    %301 = vdwg.mxu0
    %302 = vst [vmem:[#allocation8] sm:$0xff] %v299
    // Predicated region
    $region26: #{tpu_custom_call.1} parent=1 // pred_check
      _
    $region27: #{tpu_custom_call.1} parent=1 // pred_check_branch
      %304 = sbr.rel (0) target = $region29
    $region28: #{tpu_custom_call.1} parent=1 // pred_region
      %306 = vsyncadd [#allocation4], 0
      %s308 = sshll.u32 [#allocation8], 4
      %s309 = int_to_ptr.vmem [resolvable:$true] %s308
      %s310 = sshll.u32 %s3, 4
      %s311 = int_to_ptr.hbm [resolvable:$true] %s310
      %313 = dma.vmem_to_hbm [thread:$0]  %s309, 128, %s311, [#allocation4]
    $region29: #{tpu_custom_call.1} parent=1 // pred_fallthru
      _
    // Predicated region
    $region30: #{tpu_custom_call.1} parent=1 // pred_check
      _
    $region31: #{tpu_custom_call.1} parent=1 // pred_check_branch
      %315 = sbr.rel (0) target = $region33
    $region32: #{tpu_custom_call.1} parent=1 // pred_region
      %317 = dma.done [#allocation4], 128
    $region33: #{tpu_custom_call.1} parent=1 // pred_fallthru
      _
    %318 = vsyncpa [#allocation3], 1
    %319 = vsyncpa [#allocation6], 1
    %320 = vsyncpa [#allocation4], 1

</llo_original>
